<compile_context>
chip_gen: v6e
topology: v6e:2x2x1
jax: 0.10.0
libtpu: 0.0.40
codegen_flags: <defaults>
</compile_context>

<pallas_src>
import jax
import jax.numpy as jnp
from jax.experimental import pallas as pl
from jax.experimental.pallas import tpu as pltpu

DIMS = [8, 16, 256, 64, 32, 16, 1]
INS = tuple(DIMS[:-1])       # (8, 16, 256, 64, 32, 16)
OUTS = tuple(DIMS[1:])       # (16, 256, 64, 32, 16, 1)

# Static row offsets of each layer inside the packed weight/bias slabs.
_row_offs = []
_off = 0
for _o in OUTS:
    _row_offs.append(_off)
    _off += _o
ROW_OFFS = tuple(_row_offs)                 # (0, 16, 272, 336, 368, 384)
TOTAL_ROWS = ((_off + 7) // 8) * 8          # 392 (sublane-aligned)
MAX_IN = max(INS)                           # 256


def mlp_kernel(x_ref, w_ref, b_ref, o_ref):
    """Fused 6-layer MLP. Activations are feature-major: (features, TILE_B)."""
    x = x_ref[...]                                            # (TILE_B, 8) f32

    def wb(i):
        r0, out, kin = ROW_OFFS[i], OUTS[i], INS[i]
        return w_ref[r0:r0 + out, :kin], b_ref[r0:r0 + out, :]

    # Layer 1: contract the feature axis of batch-major x directly
    # (W1 @ x^T expressed as a dot_general -> no explicit transpose op).
    w, b = wb(0)
    h = jax.lax.dot_general(w, x, (((1,), (1,)), ((), ())),
                            preferred_element_type=jnp.float32)   # (16, TILE_B)
    h = jnp.maximum(h + b, 0.0)

    # Hidden layers 2..5: W (out, in) @ h (in, TILE_B), f32 MXU + f32 epilogue.
    for i in range(1, len(OUTS) - 1):
        w, b = wb(i)
        h = jnp.dot(w, h, preferred_element_type=jnp.float32)
        h = jnp.maximum(h + b, 0.0)

    # Output layer (no ReLU) -> (1, TILE_B), lane-dense store.
    w, b = wb(len(OUTS) - 1)
    o_ref[...] = (jnp.dot(w, h, preferred_element_type=jnp.float32) + b
                  ).astype(o_ref.dtype)


def _round_up(v, m):
    return ((v + m - 1) // m) * m


def pack_params(params):
    """Pack [(W (out,in), b (out,))] into two padded slabs (done once, not per call)."""
    w_slab = jnp.zeros((TOTAL_ROWS, MAX_IN), jnp.float32)
    b_slab = jnp.zeros((TOTAL_ROWS, 1), jnp.float32)
    for (w, b), off, out, kin in zip(params, ROW_OFFS, OUTS, INS):
        w_slab = w_slab.at[off:off + out, :kin].set(w.astype(jnp.float32))
        b_slab = b_slab.at[off:off + out, 0].set(b.astype(jnp.float32))
    return w_slab, b_slab


def price_prediction_forward(x, w_slab, b_slab, *, tile_b=2048):
    """x: (B, 8) float32 -> (B, 1) float32."""
    B = x.shape[0]
    b_ceil = _round_up(B, 128)
    tile_b = max(128, min(_round_up(tile_b, 128), b_ceil))
    # v7x: guarantee >= 2 grid steps when the batch allows it, so both
    # TensorCores get work under dimension_semantics=("parallel",).
    if b_ceil // tile_b < 2 and b_ceil >= 256:
        tile_b = _round_up(pl.cdiv(b_ceil, 2), 128)
    b_pad = _round_up(B, tile_b)
    if b_pad != B:
        # Cheap batch-major row pad only (no transpose / relayout pass).
        x = jnp.pad(x, ((0, b_pad - B), (0, 0)))

    grid = (b_pad // tile_b,)
    out = pl.pallas_call(
        mlp_kernel,
        out_shape=jax.ShapeDtypeStruct((1, b_pad), jnp.float32),
        grid=grid,
        in_specs=[
            pl.BlockSpec((tile_b, DIMS[0]), lambda i: (i, 0)),      # x tile
            pl.BlockSpec((TOTAL_ROWS, MAX_IN), lambda i: (0, 0)),   # weights, resident
            pl.BlockSpec((TOTAL_ROWS, 1), lambda i: (0, 0)),        # biases, resident
        ],
        out_specs=pl.BlockSpec((1, tile_b), lambda i: (0, i)),
        compiler_params=pltpu.CompilerParams(
            dimension_semantics=("parallel",)),
    )(x, w_slab, b_slab)

    return out[0, :B].reshape(B, 1)


def init_params(key):
    """nn.Linear-style init: W (out,in), b (out,), uniform(+-1/sqrt(fan_in))."""
    params = []
    for fan_in, fan_out in zip(INS, OUTS):
        key, kw, kb = jax.random.split(key, 3)
        bound = float(fan_in) ** -0.5
        w = jax.random.uniform(kw, (fan_out, fan_in), jnp.float32, -bound, bound)
        b = jax.random.uniform(kb, (fan_out,), jnp.float32, -bound, bound)
        params.append((w, b))
    return params


def reference_forward(x, params):
    """Pure-JAX f32 reference matching the PyTorch forward."""
    h = x
    n = len(params)
    for i, (w, b) in enumerate(params):
        h = h @ w.T + b[None, :]
        if i < n - 1:
            h = jnp.maximum(h, 0.0)
    return h


if __name__ == "__main__":
    key = jax.random.PRNGKey(0)
    kx, kp = jax.random.split(key)

    B = 8  # small demo batch; large batches use the same path with multi-step grid
    x = jax.random.normal(kx, (B, 8), jnp.float32)
    params = init_params(kp)
    w_slab, b_slab = pack_params(params)  # pack once, reuse across calls

    out = jax.block_until_ready(price_prediction_forward(x, w_slab, b_slab))
    ref = reference_forward(x, params)

    assert out.shape == (B, 1), out.shape
    # f32 MXU operands -> should track the f32 reference closely.
    assert jnp.allclose(out, ref, atol=2e-2, rtol=2e-2), (out, ref)

    print("KERNEL_OK")
</pallas_src>

<mosaic_0001>
module attributes {stable_mosaic.version = 11 : i64} {
  func.func @mlp_kernel(%arg0: i32, %arg1: memref<128x8xf32, #tpu.memory_space<vmem>>, %arg2: memref<392x256xf32, #tpu.memory_space<vmem>>, %arg3: memref<392x1xf32, #tpu.memory_space<vmem>>, %arg4: memref<1x128xf32, #tpu.memory_space<vmem>>) attributes {dimension_semantics = [#tpu.dimension_semantics<parallel>], iteration_bounds = array<i64: 1>, scalar_prefetch = 0 : i64, scratch_operands = 0 : i64, tpu.core_type = #tpu.core_type<tc>, window_params = [{transform_indices = @transform_0, window_bounds = array<i64: 128, 8>}, {pipeline_mode = #tpu.pipeline_mode<synchronous>, transform_indices = @transform_1, window_bounds = array<i64: 392, 256>}, {pipeline_mode = #tpu.pipeline_mode<synchronous>, transform_indices = @transform_2, window_bounds = array<i64: 392, 1>}, {transform_indices = @transform_3, window_bounds = array<i64: 1, 128>}]} {
    %c0 = arith.constant 0 : index
    %c0_0 = arith.constant 0 : index
    %0 = vector.load %arg1[%c0, %c0_0] : memref<128x8xf32, #tpu.memory_space<vmem>>, vector<128x8xf32>
    %c0_1 = arith.constant 0 : index
    %c0_2 = arith.constant 0 : index
    %1 = vector.load %arg2[%c0_1, %c0_2] : memref<392x256xf32, #tpu.memory_space<vmem>>, vector<16x8xf32>
    %c0_3 = arith.constant 0 : index
    %c0_4 = arith.constant 0 : index
    %2 = vector.load %arg3[%c0_3, %c0_4] : memref<392x1xf32, #tpu.memory_space<vmem>>, vector<16x1xf32>
    %cst = arith.constant dense<0.000000e+00> : vector<16x128xf32>
    %3 = tpu.matmul %1, %0, %cst {dimension_numbers = #tpu.dot_dimension_numbers<[1], [1], [0], [0], [0, 0, 1, 0], [], []>} : vector<16x8xf32>, vector<128x8xf32>, vector<16x128xf32> -> vector<16x128xf32>
    %4 = vector.broadcast %2 : vector<16x1xf32> to vector<16x128xf32>
    %5 = arith.addf %3, %4 : vector<16x128xf32>
    %cst_5 = arith.constant 0.000000e+00 : f32
    %6 = vector.broadcast %cst_5 : f32 to vector<16x128xf32>
    %7 = arith.maximumf %5, %6 : vector<16x128xf32>
    %c16 = arith.constant 16 : index
    %c0_6 = arith.constant 0 : index
    %8 = vector.load %arg2[%c16, %c0_6] : memref<392x256xf32, #tpu.memory_space<vmem>>, vector<256x16xf32>
    %c16_7 = arith.constant 16 : index
    %c0_8 = arith.constant 0 : index
    %9 = vector.load %arg3[%c16_7, %c0_8] : memref<392x1xf32, #tpu.memory_space<vmem>>, vector<256x1xf32>
    %cst_9 = arith.constant dense<0.000000e+00> : vector<256x128xf32>
    %10 = tpu.matmul %8, %7, %cst_9 {dimension_numbers = #tpu.dot_dimension_numbers<[1], [0], [0], [1], [0, 0, 1, 1], [], []>} : vector<256x16xf32>, vector<16x128xf32>, vector<256x128xf32> -> vector<256x128xf32>
    %11 = vector.broadcast %9 : vector<256x1xf32> to vector<256x128xf32>
    %12 = arith.addf %10, %11 : vector<256x128xf32>
    %cst_10 = arith.constant 0.000000e+00 : f32
    %13 = vector.broadcast %cst_10 : f32 to vector<256x128xf32>
    %14 = arith.maximumf %12, %13 : vector<256x128xf32>
    %c272 = arith.constant 272 : index
    %c0_11 = arith.constant 0 : index
    %15 = vector.load %arg2[%c272, %c0_11] : memref<392x256xf32, #tpu.memory_space<vmem>>, vector<64x256xf32>
    %c272_12 = arith.constant 272 : index
    %c0_13 = arith.constant 0 : index
    %16 = vector.load %arg3[%c272_12, %c0_13] : memref<392x1xf32, #tpu.memory_space<vmem>>, vector<64x1xf32>
    %cst_14 = arith.constant dense<0.000000e+00> : vector<64x128xf32>
    %17 = tpu.matmul %15, %14, %cst_14 {dimension_numbers = #tpu.dot_dimension_numbers<[1], [0], [0], [1], [0, 0, 1, 1], [], []>} : vector<64x256xf32>, vector<256x128xf32>, vector<64x128xf32> -> vector<64x128xf32>
    %18 = vector.broadcast %16 : vector<64x1xf32> to vector<64x128xf32>
    %19 = arith.addf %17, %18 : vector<64x128xf32>
    %cst_15 = arith.constant 0.000000e+00 : f32
    %20 = vector.broadcast %cst_15 : f32 to vector<64x128xf32>
    %21 = arith.maximumf %19, %20 : vector<64x128xf32>
    %c336 = arith.constant 336 : index
    %c0_16 = arith.constant 0 : index
    %22 = vector.load %arg2[%c336, %c0_16] : memref<392x256xf32, #tpu.memory_space<vmem>>, vector<32x64xf32>
    %c336_17 = arith.constant 336 : index
    %c0_18 = arith.constant 0 : index
    %23 = vector.load %arg3[%c336_17, %c0_18] : memref<392x1xf32, #tpu.memory_space<vmem>>, vector<32x1xf32>
    %cst_19 = arith.constant dense<0.000000e+00> : vector<32x128xf32>
    %24 = tpu.matmul %22, %21, %cst_19 {dimension_numbers = #tpu.dot_dimension_numbers<[1], [0], [0], [1], [0, 0, 1, 1], [], []>} : vector<32x64xf32>, vector<64x128xf32>, vector<32x128xf32> -> vector<32x128xf32>
    %25 = vector.broadcast %23 : vector<32x1xf32> to vector<32x128xf32>
    %26 = arith.addf %24, %25 : vector<32x128xf32>
    %cst_20 = arith.constant 0.000000e+00 : f32
    %27 = vector.broadcast %cst_20 : f32 to vector<32x128xf32>
    %28 = arith.maximumf %26, %27 : vector<32x128xf32>
    %c368 = arith.constant 368 : index
    %c0_21 = arith.constant 0 : index
    %29 = vector.load %arg2[%c368, %c0_21] : memref<392x256xf32, #tpu.memory_space<vmem>>, vector<16x32xf32>
    %c368_22 = arith.constant 368 : index
    %c0_23 = arith.constant 0 : index
    %30 = vector.load %arg3[%c368_22, %c0_23] : memref<392x1xf32, #tpu.memory_space<vmem>>, vector<16x1xf32>
    %cst_24 = arith.constant dense<0.000000e+00> : vector<16x128xf32>
    %31 = tpu.matmul %29, %28, %cst_24 {dimension_numbers = #tpu.dot_dimension_numbers<[1], [0], [0], [1], [0, 0, 1, 1], [], []>} : vector<16x32xf32>, vector<32x128xf32>, vector<16x128xf32> -> vector<16x128xf32>
    %32 = vector.broadcast %30 : vector<16x1xf32> to vector<16x128xf32>
    %33 = arith.addf %31, %32 : vector<16x128xf32>
    %cst_25 = arith.constant 0.000000e+00 : f32
    %34 = vector.broadcast %cst_25 : f32 to vector<16x128xf32>
    %35 = arith.maximumf %33, %34 : vector<16x128xf32>
    %c384 = arith.constant 384 : index
    %c0_26 = arith.constant 0 : index
    %36 = vector.load %arg2[%c384, %c0_26] : memref<392x256xf32, #tpu.memory_space<vmem>>, vector<1x16xf32>
    %c384_27 = arith.constant 384 : index
    %c0_28 = arith.constant 0 : index
    %37 = vector.load %arg3[%c384_27, %c0_28] : memref<392x1xf32, #tpu.memory_space<vmem>>, vector<1x1xf32>
    %cst_29 = arith.constant dense<0.000000e+00> : vector<1x128xf32>
    %38 = tpu.matmul %36, %35, %cst_29 {dimension_numbers = #tpu.dot_dimension_numbers<[1], [0], [0], [1], [0, 0, 1, 1], [], []>} : vector<1x16xf32>, vector<16x128xf32>, vector<1x128xf32> -> vector<1x128xf32>
    %39 = vector.broadcast %37 : vector<1x1xf32> to vector<1x128xf32>
    %40 = arith.addf %38, %39 : vector<1x128xf32>
    %c0_30 = arith.constant 0 : index
    %c0_31 = arith.constant 0 : index
    %41 = vector.load %arg4[%c0_30, %c0_31] : memref<1x128xf32, #tpu.memory_space<vmem>>, vector<1x128xf32>
    tpu.vector_store %arg4[%c0_30, %c0_31], %40 {strides = array<i32>} : memref<1x128xf32, #tpu.memory_space<vmem>>, vector<1x128xf32>,
    return
  }
  func.func @transform_0(%arg0: i32) -> (i32, i32) {
    %c0_i32 = arith.constant 0 : i32
    %c0_i32_0 = arith.constant 0 : i32
    return %arg0, %c0_i32 : i32, i32
  }
  func.func @transform_1(%arg0: i32) -> (i32, i32) {
    %c0_i32 = arith.constant 0 : i32
    %c0_i32_0 = arith.constant 0 : i32
    %c0_i32_1 = arith.constant 0 : i32
    return %c0_i32, %c0_i32_0 : i32, i32
  }
  func.func @transform_2(%arg0: i32) -> (i32, i32) {
    %c0_i32 = arith.constant 0 : i32
    %c0_i32_0 = arith.constant 0 : i32
    %c0_i32_1 = arith.constant 0 : i32
    return %c0_i32, %c0_i32_0 : i32, i32
  }
  func.func @transform_3(%arg0: i32) -> (i32, i32) {
    %c0_i32 = arith.constant 0 : i32
    %c0_i32_0 = arith.constant 0 : i32
    return %c0_i32, %arg0 : i32, i32
  }
}

</mosaic_0001>

<llo_original>
// kernel: tpu_custom_call.1
$region0: #{tpu_custom_call.1}
  #allocation0 [shape = 'u32[]', space=smem, size = 0x4, offset = 0x4, fixed_abs, tag = 'smem constant byte address 0x4 - core index']
  #allocation1 [shape = 'u32[144,128]{1,0:T(1,128)}', space=vmem, size = 0x12000, scoped, tag = 'internal scratch']
  %s0 = inlined_call_operand.vmem [shape: f32[128,8], index: 0, kind: input, shape index: {}]
  %s1 = inlined_call_operand.hbm [shape: f32[392,256], index: 1, kind: input, shape index: {}]
  %s2 = inlined_call_operand.vmem [shape: f32[392,1], index: 2, kind: input, shape index: {}]
  %s3 = inlined_call_operand.hbm [shape: f32[1,128], index: 3, kind: output, shape index: {}]
  %s4 = sld [smem:[#allocation0]]
  $region26: #{tpu_custom_call.1} parent=0
    _
  %s6 = ssub.s32 1, %s4
  %s7 = scalar_select 0, %s6, %s4
  $region1: #{tpu_custom_call.1} parent=0
    #allocation2 [shape = 'u8[401408]{0}', space=vmem, size = 0x62000, scoped, tag = 'input window, operand 1, single buffered']
    #allocation3 [shape = 's32[1]{0}', space=sflag, size = 0x4, scoped, tag = 'scoped memory for tpu_custom_call.1']
    #allocation4 [shape = 's32[1]{0}', space=sflag, size = 0x4, scoped, tag = 'scoped memory for tpu_custom_call.1']
    #allocation5 [shape = 'u8[512]{0}', space=vmem, size = 0x400, scoped, tag = 'output window, operand 0, single buffered']
    %8 = vsyncpa [#allocation3], 0
    %9 = vsyncpa [#allocation4], 0
    // Predicated region
    $region2: #{tpu_custom_call.1} parent=1 // pred_check
      _
    $region3: #{tpu_custom_call.1} parent=1 // pred_check_branch
      %11 = sbr.rel (0) target = $region5
    $region4: #{tpu_custom_call.1} parent=1 // pred_region
      _
    $region5: #{tpu_custom_call.1} parent=1 // pred_fallthru
      _
    // Predicated region
    $region6: #{tpu_custom_call.1} parent=1 // pred_check
      _
    $region7: #{tpu_custom_call.1} parent=1 // pred_check_branch
      %13 = sbr.rel (0) target = $region9
    $region8: #{tpu_custom_call.1} parent=1 // pred_region
      %s15 = ssub.s32 12544, 12544
      %16 = vsyncadd [#allocation3], %s15
      %s17 = sshll.u32 [#allocation2], 4
      %s18 = int_to_ptr.vmem [resolvable:$true] %s17
      %23 = dma.hbm_to_vmem [thread:$0]  %s1, 12544, %s18, [#allocation3], 256, 256, 16
    $region9: #{tpu_custom_call.1} parent=1 // pred_fallthru
      _
    // Predicated region
    $region10: #{tpu_custom_call.1} parent=1 // pred_check
      _
    $region11: #{tpu_custom_call.1} parent=1 // pred_check_branch
      %25 = sbr.rel (0) target = $region13
    $region12: #{tpu_custom_call.1} parent=1 // pred_region
      _
    $region13: #{tpu_custom_call.1} parent=1 // pred_fallthru
      _
    // Predicated region
    $region14: #{tpu_custom_call.1} parent=1 // pred_check
      _
    $region15: #{tpu_custom_call.1} parent=1 // pred_check_branch
      %27 = sbr.rel (0) target = $region17
    $region16: #{tpu_custom_call.1} parent=1 // pred_region
      %28 = dma.done [#allocation3], 12544
    $region17: #{tpu_custom_call.1} parent=1 // pred_fallthru
      _
    %v29 = vld [vmem:[%s0] sm:$0xff]
    %v30 = vld [vmem:[%s0 + $0x8] sm:$0xff]
    %v31 = vld [vmem:[%s0 + $0x10] sm:$0xff]
    %v32 = vld [vmem:[%s0 + $0x18] sm:$0xff]
    %v33 = vld [vmem:[%s0 + $0x20] sm:$0xff]
    %v34 = vld [vmem:[%s0 + $0x28] sm:$0xff]
    %v35 = vld [vmem:[%s0 + $0x30] sm:$0xff]
    %v36 = vld [vmem:[%s0 + $0x38] sm:$0xff]
    %v37 = vld [vmem:[%s0 + $0x40] sm:$0xff]
    %v38 = vld [vmem:[%s0 + $0x48] sm:$0xff]
    %v39 = vld [vmem:[%s0 + $0x50] sm:$0xff]
    %v40 = vld [vmem:[%s0 + $0x58] sm:$0xff]
    %v41 = vld [vmem:[%s0 + $0x60] sm:$0xff]
    %v42 = vld [vmem:[%s0 + $0x68] sm:$0xff]
    %v43 = vld [vmem:[%s0 + $0x70] sm:$0xff]
    %v44 = vld [vmem:[%s0 + $0x78] sm:$0xff]
    %v45 = vld [vmem:[#allocation2] sm:$0xff]
    %v46 = vld [vmem:[#allocation2 + $0x10] sm:$0xff]
    %v47 = vld [vmem:[%s2] sm:$0xff]
    %v48 = vld [vmem:[%s2 + $0x8] sm:$0xff]
    %50 = vset.pattern.permute.xlu0 0
    %51 = vperm.xlu0 %50, %v47
    %v52 = vpop.permute.xlu0 %51
    %55 = vset.pattern.permute.xlu0 0
    %56 = vperm.xlu0 %55, %v48
    %v57 = vpop.permute.xlu0 %56
    %vm59 = vcmask 64512
    %v61 = vsel %vm59, %v45, 0
    %v64 = vsel %vm59, %v46, 0
    %v67 = vsel %vm59, %v29, 0
    %v70 = vsel %vm59, %v30, 0
    %v73 = vsel %vm59, %v31, 0
    %v76 = vsel %vm59, %v32, 0
    %v79 = vsel %vm59, %v33, 0
    %v82 = vsel %vm59, %v34, 0
    %v85 = vsel %vm59, %v35, 0
    %v88 = vsel %vm59, %v36, 0
    %v91 = vsel %vm59, %v37, 0
    %v94 = vsel %vm59, %v38, 0
    %v97 = vsel %vm59, %v39, 0
    %v100 = vsel %vm59, %v40, 0
    %v103 = vsel %vm59, %v41, 0
    %v106 = vsel %vm59, %v42, 0
    %v109 = vsel %vm59, %v43, 0
    %v112 = vsel %vm59, %v44, 0
    %114 = vmatprep.subr.mxu0 0.0
    %115 = vmatpush1.xpose.msra.mxu0 %v112
    %116 = vmatprep.subr.mxu0 0.0
    %117 = vmatpush1.xpose.msra.mxu0 %v109
    %118 = vmatprep.subr.mxu0 0.0
    %119 = vmatpush1.xpose.msra.mxu0 %v106
    %120 = vmatprep.subr.mxu0 0.0
    %121 = vmatpush1.xpose.msra.mxu0 %v103
    %122 = vmatprep.subr.mxu0 0.0
    %123 = vmatpush1.xpose.msra.mxu0 %v100
    %124 = vmatprep.subr.mxu0 0.0
    %125 = vmatpush1.xpose.msra.mxu0 %v97
    %126 = vmatprep.subr.mxu0 0.0
    %127 = vmatpush1.xpose.msra.mxu0 %v94
    %128 = vmatprep.subr.mxu0 0.0
    %129 = vmatpush1.xpose.msra.mxu0 %v91
    %130 = vmatprep.subr.mxu0 0.0
    %131 = vmatpush1.xpose.msra.mxu0 %v88
    %132 = vmatprep.subr.mxu0 0.0
    %133 = vmatpush1.xpose.msra.mxu0 %v85
    %134 = vmatprep.subr.mxu0 0.0
    %135 = vmatpush1.xpose.msra.mxu0 %v82
    %136 = vmatprep.subr.mxu0 0.0
    %137 = vmatpush1.xpose.msra.mxu0 %v79
    %138 = vmatprep.subr.mxu0 0.0
    %139 = vmatpush1.xpose.msra.mxu0 %v76
    %140 = vmatprep.subr.mxu0 0.0
    %141 = vmatpush1.xpose.msra.mxu0 %v73
    %142 = vmatprep.subr.mxu0 0.0
    %143 = vmatpush1.xpose.msra.mxu0 %v70
    %144 = vmatprep.subr.mxu0 0.0
    %145 = vmatpush1.xpose.msra.mxu0 %v67
    %146 = vmatprep.subr.mxu0 0.0
    %147 = vmatpush2.xpose.msra.mxu0 0.0
    %148 = vmatprep.subr.mxu0 0.0
    %149 = vmatpush2.xpose.msra.mxu0 0.0
    %150 = vmatprep.subr.mxu0 0.0
    %151 = vmatpush2.xpose.msra.mxu0 0.0
    %152 = vmatprep.subr.mxu0 0.0
    %153 = vmatpush2.xpose.msra.mxu0 0.0
    %154 = vmatprep.subr.mxu0 0.0
    %155 = vmatpush2.xpose.msra.mxu0 0.0
    %156 = vmatprep.subr.mxu0 0.0
    %157 = vmatpush2.xpose.msra.mxu0 0.0
    %158 = vmatprep.subr.mxu0 0.0
    %159 = vmatpush2.xpose.msra.mxu0 0.0
    %160 = vmatprep.subr.mxu0 0.0
    %161 = vmatpush2.xpose.msra.mxu0 0.0
    %162 = vmatprep.subr.mxu0 0.0
    %163 = vmatpush2.xpose.msra.mxu0 0.0
    %164 = vmatprep.subr.mxu0 0.0
    %165 = vmatpush2.xpose.msra.mxu0 0.0
    %166 = vmatprep.subr.mxu0 0.0
    %167 = vmatpush2.xpose.msra.mxu0 0.0
    %168 = vmatprep.subr.mxu0 0.0
    %169 = vmatpush2.xpose.msra.mxu0 0.0
    %170 = vmatprep.subr.mxu0 0.0
    %171 = vmatpush2.xpose.msra.mxu0 0.0
    %172 = vmatprep.subr.mxu0 0.0
    %173 = vmatpush2.xpose.msra.mxu0 0.0
    %174 = vmatprep.subr.mxu0 0.0
    %175 = vmatpush2.xpose.msra.mxu0 0.0
    %176 = vmatprep.subr.mxu0 0.0
    %177 = vmatpush2.xpose.msra.mxu0 0.0
    %178 = vmatprep.mubr.f32.mxu0 0.0
    %179 = vmatmul.mubr.f32.gmra.mxu0 %v61
    %v180 = vpop.f32.mrf.mxu0
    %v181 = vadd.f32 %v52, %v180
    %v182 = vpop.f32.mrf.mxu0
    %183 = vmatprep.mubr.f32.mxu0 0.0
    %184 = vmatmul.mubr.f32.gmra.mxu0 %v64
    %v185 = vpop.f32.mrf.mxu0
    %v186 = vadd.f32 %v57, %v185
    %v187 = vpop.f32.mrf.mxu0
    %188 = vdwg.mxu0
    %v189 = vmax.f32 %v181, 0.0
    %v190 = vmax.f32 %v186, 0.0
    %v191 = vld [vmem:[#allocation2 + $0x20] sm:$0xff]
    %v192 = vld [vmem:[#allocation2 + $0x30] sm:$0xff]
    %v193 = vld [vmem:[#allocation2 + $0x40] sm:$0xff]
    %v194 = vld [vmem:[#allocation2 + $0x50] sm:$0xff]
    %v195 = vld [vmem:[#allocation2 + $0x60] sm:$0xff]
    %v196 = vld [vmem:[#allocation2 + $0x70] sm:$0xff]
    %v197 = vld [vmem:[#allocation2 + $0x80] sm:$0xff]
    %v198 = vld [vmem:[#allocation2 + $0x90] sm:$0xff]
    %v199 = vld [vmem:[#allocation2 + $0xa0] sm:$0xff]
    %v200 = vld [vmem:[#allocation2 + $0xb0] sm:$0xff]
    %v201 = vld [vmem:[#allocation2 + $0xc0] sm:$0xff]
    %v202 = vld [vmem:[#allocation2 + $0xd0] sm:$0xff]
    %v203 = vld [vmem:[#allocation2 + $0xe0] sm:$0xff]
    %v204 = vld [vmem:[#allocation2 + $0xf0] sm:$0xff]
    %v205 = vld [vmem:[#allocation2 + $0x100] sm:$0xff]
    %v206 = vld [vmem:[#allocation2 + $0x110] sm:$0xff]
    %v207 = vld [vmem:[#allocation2 + $0x120] sm:$0xff]
    %v208 = vld [vmem:[#allocation2 + $0x130] sm:$0xff]
    %v209 = vld [vmem:[#allocation2 + $0x140] sm:$0xff]
    %v210 = vld [vmem:[#allocation2 + $0x150] sm:$0xff]
    %v211 = vld [vmem:[#allocation2 + $0x160] sm:$0xff]
    %v212 = vld [vmem:[#allocation2 + $0x170] sm:$0xff]
    %v213 = vld [vmem:[#allocation2 + $0x180] sm:$0xff]
    %v214 = vld [vmem:[#allocation2 + $0x190] sm:$0xff]
    %v215 = vld [vmem:[#allocation2 + $0x1a0] sm:$0xff]
    %v216 = vld [vmem:[#allocation2 + $0x1b0] sm:$0xff]
    %v217 = vld [vmem:[#allocation2 + $0x1c0] sm:$0xff]
    %v218 = vld [vmem:[#allocation2 + $0x1d0] sm:$0xff]
    %v219 = vld [vmem:[#allocation2 + $0x1e0] sm:$0xff]
    %v220 = vld [vmem:[#allocation2 + $0x1f0] sm:$0xff]
    %v221 = vld [vmem:[#allocation2 + $0x200] sm:$0xff]
    %v222 = vld [vmem:[#allocation2 + $0x210] sm:$0xff]
    %v223 = vld [vmem:[%s2 + $0x10] sm:$0xff]
    %v224 = vld [vmem:[%s2 + $0x18] sm:$0xff]
    %v225 = vld [vmem:[%s2 + $0x20] sm:$0xff]
    %v226 = vld [vmem:[%s2 + $0x28] sm:$0xff]
    %v227 = vld [vmem:[%s2 + $0x30] sm:$0xff]
    %v228 = vld [vmem:[%s2 + $0x38] sm:$0xff]
    %v229 = vld [vmem:[%s2 + $0x40] sm:$0xff]
    %v230 = vld [vmem:[%s2 + $0x48] sm:$0xff]
    %v231 = vld [vmem:[%s2 + $0x50] sm:$0xff]
    %v232 = vld [vmem:[%s2 + $0x58] sm:$0xff]
    %v233 = vld [vmem:[%s2 + $0x60] sm:$0xff]
    %v234 = vld [vmem:[%s2 + $0x68] sm:$0xff]
    %v235 = vld [vmem:[%s2 + $0x70] sm:$0xff]
    %v236 = vld [vmem:[%s2 + $0x78] sm:$0xff]
    %v237 = vld [vmem:[%s2 + $0x80] sm:$0xff]
    %v238 = vld [vmem:[%s2 + $0x88] sm:$0xff]
    %v239 = vld [vmem:[%s2 + $0x90] sm:$0xff]
    %v240 = vld [vmem:[%s2 + $0x98] sm:$0xff]
    %v241 = vld [vmem:[%s2 + $0xa0] sm:$0xff]
    %v242 = vld [vmem:[%s2 + $0xa8] sm:$0xff]
    %v243 = vld [vmem:[%s2 + $0xb0] sm:$0xff]
    %v244 = vld [vmem:[%s2 + $0xb8] sm:$0xff]
    %v245 = vld [vmem:[%s2 + $0xc0] sm:$0xff]
    %v246 = vld [vmem:[%s2 + $0xc8] sm:$0xff]
    %v247 = vld [vmem:[%s2 + $0xd0] sm:$0xff]
    %v248 = vld [vmem:[%s2 + $0xd8] sm:$0xff]
    %v249 = vld [vmem:[%s2 + $0xe0] sm:$0xff]
    %v250 = vld [vmem:[%s2 + $0xe8] sm:$0xff]
    %v251 = vld [vmem:[%s2 + $0xf0] sm:$0xff]
    %v252 = vld [vmem:[%s2 + $0xf8] sm:$0xff]
    %v253 = vld [vmem:[%s2 + $0x100] sm:$0xff]
    %v254 = vld [vmem:[%s2 + $0x108] sm:$0xff]
    %256 = vset.pattern.permute.xlu0 0
    %257 = vperm.xlu0 %256, %v223
    %v258 = vpop.permute.xlu0 %257
    %261 = vset.pattern.permute.xlu0 0
    %262 = vperm.xlu0 %261, %v224
    %v263 = vpop.permute.xlu0 %262
    %266 = vset.pattern.permute.xlu0 0
    %267 = vperm.xlu0 %266, %v225
    %v268 = vpop.permute.xlu0 %267
    %271 = vset.pattern.permute.xlu0 0
    %272 = vperm.xlu0 %271, %v226
    %v273 = vpop.permute.xlu0 %272
    %276 = vset.pattern.permute.xlu0 0
    %277 = vperm.xlu0 %276, %v227
    %v278 = vpop.permute.xlu0 %277
    %281 = vset.pattern.permute.xlu0 0
    %282 = vperm.xlu0 %281, %v228
    %v283 = vpop.permute.xlu0 %282
    %286 = vset.pattern.permute.xlu0 0
    %287 = vperm.xlu0 %286, %v229
    %v288 = vpop.permute.xlu0 %287
    %291 = vset.pattern.permute.xlu0 0
    %292 = vperm.xlu0 %291, %v230
    %v293 = vpop.permute.xlu0 %292
    %296 = vset.pattern.permute.xlu0 0
    %297 = vperm.xlu0 %296, %v231
    %v298 = vpop.permute.xlu0 %297
    %301 = vset.pattern.permute.xlu0 0
    %302 = vperm.xlu0 %301, %v232
    %v303 = vpop.permute.xlu0 %302
    %306 = vset.pattern.permute.xlu0 0
    %307 = vperm.xlu0 %306, %v233
    %v308 = vpop.permute.xlu0 %307
    %311 = vset.pattern.permute.xlu0 0
    %312 = vperm.xlu0 %311, %v234
    %v313 = vpop.permute.xlu0 %312
    %316 = vset.pattern.permute.xlu0 0
    %317 = vperm.xlu0 %316, %v235
    %v318 = vpop.permute.xlu0 %317
    %321 = vset.pattern.permute.xlu0 0
    %322 = vperm.xlu0 %321, %v236
    %v323 = vpop.permute.xlu0 %322
    %326 = vset.pattern.permute.xlu0 0
    %327 = vperm.xlu0 %326, %v237
    %v328 = vpop.permute.xlu0 %327
    %331 = vset.pattern.permute.xlu0 0
    %332 = vperm.xlu0 %331, %v238
    %v333 = vpop.permute.xlu0 %332
    %336 = vset.pattern.permute.xlu0 0
    %337 = vperm.xlu0 %336, %v239
    %v338 = vpop.permute.xlu0 %337
    %341 = vset.pattern.permute.xlu0 0
    %342 = vperm.xlu0 %341, %v240
    %v343 = vpop.permute.xlu0 %342
    %346 = vset.pattern.permute.xlu0 0
    %347 = vperm.xlu0 %346, %v241
    %v348 = vpop.permute.xlu0 %347
    %351 = vset.pattern.permute.xlu0 0
    %352 = vperm.xlu0 %351, %v242
    %v353 = vpop.permute.xlu0 %352
    %356 = vset.pattern.permute.xlu0 0
    %357 = vperm.xlu0 %356, %v243
    %v358 = vpop.permute.xlu0 %357
    %361 = vset.pattern.permute.xlu0 0
    %362 = vperm.xlu0 %361, %v244
    %v363 = vpop.permute.xlu0 %362
    %366 = vset.pattern.permute.xlu0 0
    %367 = vperm.xlu0 %366, %v245
    %v368 = vpop.permute.xlu0 %367
    %371 = vset.pattern.permute.xlu0 0
    %372 = vperm.xlu0 %371, %v246
    %v373 = vpop.permute.xlu0 %372
    %376 = vset.pattern.permute.xlu0 0
    %377 = vperm.xlu0 %376, %v247
    %v378 = vpop.permute.xlu0 %377
    %381 = vset.pattern.permute.xlu0 0
    %382 = vperm.xlu0 %381, %v248
    %v383 = vpop.permute.xlu0 %382
    %386 = vset.pattern.permute.xlu0 0
    %387 = vperm.xlu0 %386, %v249
    %v388 = vpop.permute.xlu0 %387
    %391 = vset.pattern.permute.xlu0 0
    %392 = vperm.xlu0 %391, %v250
    %v393 = vpop.permute.xlu0 %392
    %396 = vset.pattern.permute.xlu0 0
    %397 = vperm.xlu0 %396, %v251
    %v398 = vpop.permute.xlu0 %397
    %401 = vset.pattern.permute.xlu0 0
    %402 = vperm.xlu0 %401, %v252
    %v403 = vpop.permute.xlu0 %402
    %406 = vset.pattern.permute.xlu0 0
    %407 = vperm.xlu0 %406, %v253
    %v408 = vpop.permute.xlu0 %407
    %411 = vset.pattern.permute.xlu0 0
    %412 = vperm.xlu0 %411, %v254
    %v413 = vpop.permute.xlu0 %412
    %vm415 = vcmask 130048
    %v417 = vsel %vm415, %v191, 0
    %v420 = vsel %vm415, %v192, 0
    %v423 = vsel %vm415, %v193, 0
    %v426 = vsel %vm415, %v194, 0
    %v429 = vsel %vm415, %v195, 0
    %v432 = vsel %vm415, %v196, 0
    %v435 = vsel %vm415, %v197, 0
    %v438 = vsel %vm415, %v198, 0
    %v441 = vsel %vm415, %v199, 0
    %v444 = vsel %vm415, %v200, 0
    %v447 = vsel %vm415, %v201, 0
    %v450 = vsel %vm415, %v202, 0
    %v453 = vsel %vm415, %v203, 0
    %v456 = vsel %vm415, %v204, 0
    %v459 = vsel %vm415, %v205, 0
    %v462 = vsel %vm415, %v206, 0
    %v465 = vsel %vm415, %v207, 0
    %v468 = vsel %vm415, %v208, 0
    %v471 = vsel %vm415, %v209, 0
    %v474 = vsel %vm415, %v210, 0
    %v477 = vsel %vm415, %v211, 0
    %v480 = vsel %vm415, %v212, 0
    %v483 = vsel %vm415, %v213, 0
    %v486 = vsel %vm415, %v214, 0
    %v489 = vsel %vm415, %v215, 0
    %v492 = vsel %vm415, %v216, 0
    %v495 = vsel %vm415, %v217, 0
    %v498 = vsel %vm415, %v218, 0
    %v501 = vsel %vm415, %v219, 0
    %v504 = vsel %vm415, %v220, 0
    %v507 = vsel %vm415, %v221, 0
    %v510 = vsel %vm415, %v222, 0
    %512 = vmatprep.subr.mxu0 0.0
    %513 = vmatpush1.msra.mxu0 0.0
    %514 = vmatprep.subr.mxu0 0.0
    %515 = vmatpush1.msra.mxu0 0.0
    %516 = vmatprep.subr.mxu0 0.0
    %517 = vmatpush1.msra.mxu0 0.0
    %518 = vmatprep.subr.mxu0 0.0
    %519 = vmatpush1.msra.mxu0 0.0
    %520 = vmatprep.subr.mxu0 0.0
    %521 = vmatpush1.msra.mxu0 0.0
    %522 = vmatprep.subr.mxu0 0.0
    %523 = vmatpush1.msra.mxu0 0.0
    %524 = vmatprep.subr.mxu0 0.0
    %525 = vmatpush1.msra.mxu0 0.0
    %526 = vmatprep.subr.mxu0 0.0
    %527 = vmatpush1.msra.mxu0 0.0
    %528 = vmatprep.subr.mxu0 0.0
    %529 = vmatpush1.msra.mxu0 0.0
    %530 = vmatprep.subr.mxu0 0.0
    %531 = vmatpush1.msra.mxu0 0.0
    %532 = vmatprep.subr.mxu0 0.0
    %533 = vmatpush1.msra.mxu0 0.0
    %534 = vmatprep.subr.mxu0 0.0
    %535 = vmatpush1.msra.mxu0 0.0
    %536 = vmatprep.subr.mxu0 0.0
    %537 = vmatpush1.msra.mxu0 0.0
    %538 = vmatprep.subr.mxu0 0.0
    %539 = vmatpush1.msra.mxu0 0.0
    %540 = vmatprep.subr.mxu0 0.0
    %541 = vmatpush1.msra.mxu0 %v190
    %542 = vmatprep.subr.mxu0 0.0
    %543 = vmatpush1.msra.mxu0 %v189
    %544 = vmatprep.subr.mxu0 0.0
    %545 = vmatpush2.msra.mxu0 0.0
    %546 = vmatprep.subr.mxu0 0.0
    %547 = vmatpush2.msra.mxu0 0.0
    %548 = vmatprep.subr.mxu0 0.0
    %549 = vmatpush2.msra.mxu0 0.0
    %550 = vmatprep.subr.mxu0 0.0
    %551 = vmatpush2.msra.mxu0 0.0
    %552 = vmatprep.subr.mxu0 0.0
    %553 = vmatpush2.msra.mxu0 0.0
    %554 = vmatprep.subr.mxu0 0.0
    %555 = vmatpush2.msra.mxu0 0.0
    %556 = vmatprep.subr.mxu0 0.0
    %557 = vmatpush2.msra.mxu0 0.0
    %558 = vmatprep.subr.mxu0 0.0
    %559 = vmatpush2.msra.mxu0 0.0
    %560 = vmatprep.subr.mxu0 0.0
    %561 = vmatpush2.msra.mxu0 0.0
    %562 = vmatprep.subr.mxu0 0.0
    %563 = vmatpush2.msra.mxu0 0.0
    %564 = vmatprep.subr.mxu0 0.0
    %565 = vmatpush2.msra.mxu0 0.0
    %566 = vmatprep.subr.mxu0 0.0
    %567 = vmatpush2.msra.mxu0 0.0
    %568 = vmatprep.subr.mxu0 0.0
    %569 = vmatpush2.msra.mxu0 0.0
    %570 = vmatprep.subr.mxu0 0.0
    %571 = vmatpush2.msra.mxu0 0.0
    %572 = vmatprep.subr.mxu0 0.0
    %573 = vmatpush2.msra.mxu0 0.0
    %574 = vmatprep.subr.mxu0 0.0
    %575 = vmatpush2.msra.mxu0 0.0
    %576 = vmatprep.mubr.f32.mxu0 0.0
    %577 = vmatmul.mubr.f32.gmra.mxu0 %v417
    %v578 = vpop.f32.mrf.mxu0
    %v579 = vadd.f32 %v258, %v578
    %v580 = vpop.f32.mrf.mxu0
    %581 = vmatprep.mubr.f32.mxu0 0.0
    %582 = vmatmul.mubr.f32.gmra.mxu0 %v420
    %v583 = vpop.f32.mrf.mxu0
    %v584 = vadd.f32 %v263, %v583
    %v585 = vpop.f32.mrf.mxu0
    %586 = vmatprep.mubr.f32.mxu0 0.0
    %587 = vmatmul.mubr.f32.gmra.mxu0 %v423
    %v588 = vpop.f32.mrf.mxu0
    %v589 = vadd.f32 %v268, %v588
    %v590 = vpop.f32.mrf.mxu0
    %591 = vmatprep.mubr.f32.mxu0 0.0
    %592 = vmatmul.mubr.f32.gmra.mxu0 %v426
    %v593 = vpop.f32.mrf.mxu0
    %v594 = vadd.f32 %v273, %v593
    %v595 = vpop.f32.mrf.mxu0
    %596 = vmatprep.mubr.f32.mxu0 0.0
    %597 = vmatmul.mubr.f32.gmra.mxu0 %v429
    %v598 = vpop.f32.mrf.mxu0
    %v599 = vadd.f32 %v278, %v598
    %v600 = vpop.f32.mrf.mxu0
    %601 = vmatprep.mubr.f32.mxu0 0.0
    %602 = vmatmul.mubr.f32.gmra.mxu0 %v432
    %v603 = vpop.f32.mrf.mxu0
    %v604 = vadd.f32 %v283, %v603
    %v605 = vpop.f32.mrf.mxu0
    %606 = vmatprep.mubr.f32.mxu0 0.0
    %607 = vmatmul.mubr.f32.gmra.mxu0 %v435
    %v608 = vpop.f32.mrf.mxu0
    %v609 = vadd.f32 %v288, %v608
    %v610 = vpop.f32.mrf.mxu0
    %611 = vmatprep.mubr.f32.mxu0 0.0
    %612 = vmatmul.mubr.f32.gmra.mxu0 %v438
    %v613 = vpop.f32.mrf.mxu0
    %v614 = vadd.f32 %v293, %v613
    %v615 = vpop.f32.mrf.mxu0
    %616 = vmatprep.mubr.f32.mxu0 0.0
    %617 = vmatmul.mubr.f32.gmra.mxu0 %v441
    %v618 = vpop.f32.mrf.mxu0
    %v619 = vadd.f32 %v298, %v618
    %v620 = vpop.f32.mrf.mxu0
    %621 = vmatprep.mubr.f32.mxu0 0.0
    %622 = vmatmul.mubr.f32.gmra.mxu0 %v444
    %v623 = vpop.f32.mrf.mxu0
    %v624 = vadd.f32 %v303, %v623
    %v625 = vpop.f32.mrf.mxu0
    %626 = vmatprep.mubr.f32.mxu0 0.0
    %627 = vmatmul.mubr.f32.gmra.mxu0 %v447
    %v628 = vpop.f32.mrf.mxu0
    %v629 = vadd.f32 %v308, %v628
    %v630 = vpop.f32.mrf.mxu0
    %631 = vmatprep.mubr.f32.mxu0 0.0
    %632 = vmatmul.mubr.f32.gmra.mxu0 %v450
    %v633 = vpop.f32.mrf.mxu0
    %v634 = vadd.f32 %v313, %v633
    %v635 = vpop.f32.mrf.mxu0
    %636 = vmatprep.mubr.f32.mxu0 0.0
    %637 = vmatmul.mubr.f32.gmra.mxu0 %v453
    %v638 = vpop.f32.mrf.mxu0
    %v639 = vadd.f32 %v318, %v638
    %v640 = vpop.f32.mrf.mxu0
    %641 = vmatprep.mubr.f32.mxu0 0.0
    %642 = vmatmul.mubr.f32.gmra.mxu0 %v456
    %v643 = vpop.f32.mrf.mxu0
    %v644 = vadd.f32 %v323, %v643
    %v645 = vpop.f32.mrf.mxu0
    %646 = vmatprep.mubr.f32.mxu0 0.0
    %647 = vmatmul.mubr.f32.gmra.mxu0 %v459
    %v648 = vpop.f32.mrf.mxu0
    %v649 = vadd.f32 %v328, %v648
    %v650 = vpop.f32.mrf.mxu0
    %651 = vmatprep.mubr.f32.mxu0 0.0
    %652 = vmatmul.mubr.f32.gmra.mxu0 %v462
    %v653 = vpop.f32.mrf.mxu0
    %v654 = vadd.f32 %v333, %v653
    %v655 = vpop.f32.mrf.mxu0
    %656 = vmatprep.mubr.f32.mxu0 0.0
    %657 = vmatmul.mubr.f32.gmra.mxu0 %v465
    %v658 = vpop.f32.mrf.mxu0
    %v659 = vadd.f32 %v338, %v658
    %v660 = vpop.f32.mrf.mxu0
    %661 = vmatprep.mubr.f32.mxu0 0.0
    %662 = vmatmul.mubr.f32.gmra.mxu0 %v468
    %v663 = vpop.f32.mrf.mxu0
    %v664 = vadd.f32 %v343, %v663
    %v665 = vpop.f32.mrf.mxu0
    %666 = vmatprep.mubr.f32.mxu0 0.0
    %667 = vmatmul.mubr.f32.gmra.mxu0 %v471
    %v668 = vpop.f32.mrf.mxu0
    %v669 = vadd.f32 %v348, %v668
    %v670 = vpop.f32.mrf.mxu0
    %671 = vmatprep.mubr.f32.mxu0 0.0
    %672 = vmatmul.mubr.f32.gmra.mxu0 %v474
    %v673 = vpop.f32.mrf.mxu0
    %v674 = vadd.f32 %v353, %v673
    %v675 = vpop.f32.mrf.mxu0
    %676 = vmatprep.mubr.f32.mxu0 0.0
    %677 = vmatmul.mubr.f32.gmra.mxu0 %v477
    %v678 = vpop.f32.mrf.mxu0
    %v679 = vadd.f32 %v358, %v678
    %v680 = vpop.f32.mrf.mxu0
    %681 = vmatprep.mubr.f32.mxu0 0.0
    %682 = vmatmul.mubr.f32.gmra.mxu0 %v480
    %v683 = vpop.f32.mrf.mxu0
    %v684 = vadd.f32 %v363, %v683
    %v685 = vpop.f32.mrf.mxu0
    %686 = vmatprep.mubr.f32.mxu0 0.0
    %687 = vmatmul.mubr.f32.gmra.mxu0 %v483
    %v688 = vpop.f32.mrf.mxu0
    %v689 = vadd.f32 %v368, %v688
    %v690 = vpop.f32.mrf.mxu0
    %691 = vmatprep.mubr.f32.mxu0 0.0
    %692 = vmatmul.mubr.f32.gmra.mxu0 %v486
    %v693 = vpop.f32.mrf.mxu0
    %v694 = vadd.f32 %v373, %v693
    %v695 = vpop.f32.mrf.mxu0
    %696 = vmatprep.mubr.f32.mxu0 0.0
    %697 = vmatmul.mubr.f32.gmra.mxu0 %v489
    %v698 = vpop.f32.mrf.mxu0
    %v699 = vadd.f32 %v378, %v698
    %v700 = vpop.f32.mrf.mxu0
    %701 = vmatprep.mubr.f32.mxu0 0.0
    %702 = vmatmul.mubr.f32.gmra.mxu0 %v492
    %v703 = vpop.f32.mrf.mxu0
    %v704 = vadd.f32 %v383, %v703
    %v705 = vpop.f32.mrf.mxu0
    %706 = vmatprep.mubr.f32.mxu0 0.0
    %707 = vmatmul.mubr.f32.gmra.mxu0 %v495
    %v708 = vpop.f32.mrf.mxu0
    %v709 = vadd.f32 %v388, %v708
    %v710 = vpop.f32.mrf.mxu0
    %711 = vmatprep.mubr.f32.mxu0 0.0
    %712 = vmatmul.mubr.f32.gmra.mxu0 %v498
    %v713 = vpop.f32.mrf.mxu0
    %v714 = vadd.f32 %v393, %v713
    %v715 = vpop.f32.mrf.mxu0
    %716 = vmatprep.mubr.f32.mxu0 0.0
    %717 = vmatmul.mubr.f32.gmra.mxu0 %v501
    %v718 = vpop.f32.mrf.mxu0
    %v719 = vadd.f32 %v398, %v718
    %v720 = vpop.f32.mrf.mxu0
    %721 = vmatprep.mubr.f32.mxu0 0.0
    %722 = vmatmul.mubr.f32.gmra.mxu0 %v504
    %v723 = vpop.f32.mrf.mxu0
    %v724 = vadd.f32 %v403, %v723
    %v725 = vpop.f32.mrf.mxu0
    %726 = vmatprep.mubr.f32.mxu0 0.0
    %727 = vmatmul.mubr.f32.gmra.mxu0 %v507
    %v728 = vpop.f32.mrf.mxu0
    %v729 = vadd.f32 %v408, %v728
    %v730 = vpop.f32.mrf.mxu0
    %731 = vmatprep.mubr.f32.mxu0 0.0
    %732 = vmatmul.mubr.f32.gmra.mxu0 %v510
    %v733 = vpop.f32.mrf.mxu0
    %v734 = vadd.f32 %v413, %v733
    %v735 = vpop.f32.mrf.mxu0
    %736 = vdwg.mxu0
    %v737 = vmax.f32 %v579, 0.0
    %v738 = vmax.f32 %v584, 0.0
    %v739 = vmax.f32 %v589, 0.0
    %v740 = vmax.f32 %v594, 0.0
    %v741 = vmax.f32 %v599, 0.0
    %v742 = vmax.f32 %v604, 0.0
    %v743 = vmax.f32 %v609, 0.0
    %v744 = vmax.f32 %v614, 0.0
    %v745 = vmax.f32 %v619, 0.0
    %v746 = vmax.f32 %v624, 0.0
    %v747 = vmax.f32 %v629, 0.0
    %v748 = vmax.f32 %v634, 0.0
    %v749 = vmax.f32 %v639, 0.0
    %v750 = vmax.f32 %v644, 0.0
    %v751 = vmax.f32 %v649, 0.0
    %v752 = vmax.f32 %v654, 0.0
    %v753 = vmax.f32 %v659, 0.0
    %v754 = vmax.f32 %v664, 0.0
    %v755 = vmax.f32 %v669, 0.0
    %v756 = vmax.f32 %v674, 0.0
    %v757 = vmax.f32 %v679, 0.0
    %v758 = vmax.f32 %v684, 0.0
    %v759 = vmax.f32 %v689, 0.0
    %v760 = vmax.f32 %v694, 0.0
    %v761 = vmax.f32 %v699, 0.0
    %v762 = vmax.f32 %v704, 0.0
    %v763 = vmax.f32 %v709, 0.0
    %v764 = vmax.f32 %v714, 0.0
    %v765 = vmax.f32 %v719, 0.0
    %v766 = vmax.f32 %v724, 0.0
    %v767 = vmax.f32 %v729, 0.0
    %v768 = vmax.f32 %v734, 0.0
    %v769 = vld [vmem:[#allocation2 + $0x220] sm:$0xff]
    %v770 = vld [vmem:[#allocation2 + $0x228] sm:$0xff]
    %v771 = vld [vmem:[#allocation2 + $0x230] sm:$0xff]
    %v772 = vld [vmem:[#allocation2 + $0x238] sm:$0xff]
    %v773 = vld [vmem:[#allocation2 + $0x240] sm:$0xff]
    %v774 = vld [vmem:[#allocation2 + $0x248] sm:$0xff]
    %v775 = vld [vmem:[#allocation2 + $0x250] sm:$0xff]
    %v776 = vld [vmem:[#allocation2 + $0x258] sm:$0xff]
    %v777 = vld [vmem:[#allocation2 + $0x260] sm:$0xff]
    %v778 = vld [vmem:[#allocation2 + $0x268] sm:$0xff]
    %v779 = vld [vmem:[#allocation2 + $0x270] sm:$0xff]
    %v780 = vld [vmem:[#allocation2 + $0x278] sm:$0xff]
    %v781 = vld [vmem:[#allocation2 + $0x280] sm:$0xff]
    %v782 = vld [vmem:[#allocation2 + $0x288] sm:$0xff]
    %v783 = vld [vmem:[#allocation2 + $0x290] sm:$0xff]
    %v784 = vld [vmem:[#allocation2 + $0x298] sm:$0xff]
    %v785 = vld [vmem:[%s2 + $0x110] sm:$0xff]
    %v786 = vld [vmem:[%s2 + $0x118] sm:$0xff]
    %v787 = vld [vmem:[%s2 + $0x120] sm:$0xff]
    %v788 = vld [vmem:[%s2 + $0x128] sm:$0xff]
    %v789 = vld [vmem:[%s2 + $0x130] sm:$0xff]
    %v790 = vld [vmem:[%s2 + $0x138] sm:$0xff]
    %v791 = vld [vmem:[%s2 + $0x140] sm:$0xff]
    %v792 = vld [vmem:[%s2 + $0x148] sm:$0xff]
    %794 = vset.pattern.permute.xlu0 0
    %795 = vperm.xlu0 %794, %v785
    %v796 = vpop.permute.xlu0 %795
    %799 = vset.pattern.permute.xlu0 0
    %800 = vperm.xlu0 %799, %v786
    %v801 = vpop.permute.xlu0 %800
    %804 = vset.pattern.permute.xlu0 0
    %805 = vperm.xlu0 %804, %v787
    %v806 = vpop.permute.xlu0 %805
    %809 = vset.pattern.permute.xlu0 0
    %810 = vperm.xlu0 %809, %v788
    %v811 = vpop.permute.xlu0 %810
    %814 = vset.pattern.permute.xlu0 0
    %815 = vperm.xlu0 %814, %v789
    %v816 = vpop.permute.xlu0 %815
    %819 = vset.pattern.permute.xlu0 0
    %820 = vperm.xlu0 %819, %v790
    %v821 = vpop.permute.xlu0 %820
    %824 = vset.pattern.permute.xlu0 0
    %825 = vperm.xlu0 %824, %v791
    %v826 = vpop.permute.xlu0 %825
    %829 = vset.pattern.permute.xlu0 0
    %830 = vperm.xlu0 %829, %v792
    %v831 = vpop.permute.xlu0 %830
    %833 = vmatprep.subr.mxu0 0.0
    %834 = vmatpush1.msra.mxu0 %v752
    %835 = vmatprep.subr.mxu0 0.0
    %836 = vmatpush1.msra.mxu0 %v751
    %837 = vmatprep.subr.mxu0 0.0
    %838 = vmatpush1.msra.mxu0 %v750
    %839 = vmatprep.subr.mxu0 0.0
    %840 = vmatpush1.msra.mxu0 %v749
    %841 = vmatprep.subr.mxu0 0.0
    %842 = vmatpush1.msra.mxu0 %v748
    %843 = vmatprep.subr.mxu0 0.0
    %844 = vmatpush1.msra.mxu0 %v747
    %845 = vmatprep.subr.mxu0 0.0
    %846 = vmatpush1.msra.mxu0 %v746
    %847 = vmatprep.subr.mxu0 0.0
    %848 = vmatpush1.msra.mxu0 %v745
    %849 = vmatprep.subr.mxu0 0.0
    %850 = vmatpush1.msra.mxu0 %v744
    %851 = vmatprep.subr.mxu0 0.0
    %852 = vmatpush1.msra.mxu0 %v743
    %853 = vmatprep.subr.mxu0 0.0
    %854 = vmatpush1.msra.mxu0 %v742
    %855 = vmatprep.subr.mxu0 0.0
    %856 = vmatpush1.msra.mxu0 %v741
    %857 = vmatprep.subr.mxu0 0.0
    %858 = vmatpush1.msra.mxu0 %v740
    %859 = vmatprep.subr.mxu0 0.0
    %860 = vmatpush1.msra.mxu0 %v739
    %861 = vmatprep.subr.mxu0 0.0
    %862 = vmatpush1.msra.mxu0 %v738
    %863 = vmatprep.subr.mxu0 0.0
    %864 = vmatpush1.msra.mxu0 %v737
    %865 = vmatprep.subr.mxu0 0.0
    %866 = vmatpush2.msra.mxu0 %v768
    %867 = vmatprep.subr.mxu0 0.0
    %868 = vmatpush2.msra.mxu0 %v767
    %869 = vmatprep.subr.mxu0 0.0
    %870 = vmatpush2.msra.mxu0 %v766
    %871 = vmatprep.subr.mxu0 0.0
    %872 = vmatpush2.msra.mxu0 %v765
    %873 = vmatprep.subr.mxu0 0.0
    %874 = vmatpush2.msra.mxu0 %v764
    %875 = vmatprep.subr.mxu0 0.0
    %876 = vmatpush2.msra.mxu0 %v763
    %877 = vmatprep.subr.mxu0 0.0
    %878 = vmatpush2.msra.mxu0 %v762
    %879 = vmatprep.subr.mxu0 0.0
    %880 = vmatpush2.msra.mxu0 %v761
    %881 = vmatprep.subr.mxu0 0.0
    %882 = vmatpush2.msra.mxu0 %v760
    %883 = vmatprep.subr.mxu0 0.0
    %884 = vmatpush2.msra.mxu0 %v759
    %885 = vmatprep.subr.mxu0 0.0
    %886 = vmatpush2.msra.mxu0 %v758
    %887 = vmatprep.subr.mxu0 0.0
    %888 = vmatpush2.msra.mxu0 %v757
    %889 = vmatprep.subr.mxu0 0.0
    %890 = vmatpush2.msra.mxu0 %v756
    %891 = vmatprep.subr.mxu0 0.0
    %892 = vmatpush2.msra.mxu0 %v755
    %893 = vmatprep.subr.mxu0 0.0
    %894 = vmatpush2.msra.mxu0 %v754
    %895 = vmatprep.subr.mxu0 0.0
    %896 = vmatpush2.msra.mxu0 %v753
    %897 = vmatprep.mubr.f32.mxu0 %v770
    %898 = vmatmul.mubr.f32.gmra.mxu0 %v769
    %v899 = vpop.f32.mrf.mxu0
    %v900 = vadd.f32 %v796, %v899
    %v901 = vpop.f32.mrf.mxu0
    %902 = vmatprep.mubr.f32.mxu0 %v772
    %903 = vmatmul.mubr.f32.gmra.mxu0 %v771
    %v904 = vpop.f32.mrf.mxu0
    %v905 = vadd.f32 %v801, %v904
    %v906 = vpop.f32.mrf.mxu0
    %907 = vmatprep.mubr.f32.mxu0 %v774
    %908 = vmatmul.mubr.f32.gmra.mxu0 %v773
    %v909 = vpop.f32.mrf.mxu0
    %v910 = vadd.f32 %v806, %v909
    %v911 = vpop.f32.mrf.mxu0
    %912 = vmatprep.mubr.f32.mxu0 %v776
    %913 = vmatmul.mubr.f32.gmra.mxu0 %v775
    %v914 = vpop.f32.mrf.mxu0
    %v915 = vadd.f32 %v811, %v914
    %v916 = vpop.f32.mrf.mxu0
    %917 = vmatprep.mubr.f32.mxu0 %v778
    %918 = vmatmul.mubr.f32.gmra.mxu0 %v777
    %v919 = vpop.f32.mrf.mxu0
    %v920 = vadd.f32 %v816, %v919
    %v921 = vpop.f32.mrf.mxu0
    %922 = vmatprep.mubr.f32.mxu0 %v780
    %923 = vmatmul.mubr.f32.gmra.mxu0 %v779
    %v924 = vpop.f32.mrf.mxu0
    %v925 = vadd.f32 %v821, %v924
    %v926 = vpop.f32.mrf.mxu0
    %927 = vmatprep.mubr.f32.mxu0 %v782
    %928 = vmatmul.mubr.f32.gmra.mxu0 %v781
    %v929 = vpop.f32.mrf.mxu0
    %v930 = vadd.f32 %v826, %v929
    %v931 = vpop.f32.mrf.mxu0
    %932 = vmatprep.mubr.f32.mxu0 %v784
    %933 = vmatmul.mubr.f32.gmra.mxu0 %v783
    %v934 = vpop.f32.mrf.mxu0
    %v935 = vadd.f32 %v831, %v934
    %v936 = vpop.f32.mrf.mxu0
    %937 = vdwg.mxu0
    %v938 = vmax.f32 %v900, 0.0
    %v939 = vmax.f32 %v905, 0.0
    %v940 = vmax.f32 %v910, 0.0
    %v941 = vmax.f32 %v915, 0.0
    %v942 = vmax.f32 %v920, 0.0
    %v943 = vmax.f32 %v925, 0.0
    %v944 = vmax.f32 %v930, 0.0
    %v945 = vmax.f32 %v935, 0.0
    %v946 = vld [vmem:[#allocation2 + $0x2a0] sm:$0xff]
    %v947 = vld [vmem:[#allocation2 + $0x2b0] sm:$0xff]
    %v948 = vld [vmem:[#allocation2 + $0x2c0] sm:$0xff]
    %v949 = vld [vmem:[#allocation2 + $0x2d0] sm:$0xff]
    %v950 = vld [vmem:[%s2 + $0x150] sm:$0xff]
    %v951 = vld [vmem:[%s2 + $0x158] sm:$0xff]
    %v952 = vld [vmem:[%s2 + $0x160] sm:$0xff]
    %v953 = vld [vmem:[%s2 + $0x168] sm:$0xff]
    %955 = vset.pattern.permute.xlu0 0
    %956 = vperm.xlu0 %955, %v950
    %v957 = vpop.permute.xlu0 %956
    %960 = vset.pattern.permute.xlu0 0
    %961 = vperm.xlu0 %960, %v951
    %v962 = vpop.permute.xlu0 %961
    %965 = vset.pattern.permute.xlu0 0
    %966 = vperm.xlu0 %965, %v952
    %v967 = vpop.permute.xlu0 %966
    %970 = vset.pattern.permute.xlu0 0
    %971 = vperm.xlu0 %970, %v953
    %v972 = vpop.permute.xlu0 %971
    %vm974 = vcmask 523264
    %v976 = vsel %vm974, %v946, 0
    %v979 = vsel %vm974, %v947, 0
    %v982 = vsel %vm974, %v948, 0
    %v985 = vsel %vm974, %v949, 0
    %987 = vmatprep.subr.mxu0 0.0
    %988 = vmatpush1.msra.mxu0 0.0
    %989 = vmatprep.subr.mxu0 0.0
    %990 = vmatpush1.msra.mxu0 0.0
    %991 = vmatprep.subr.mxu0 0.0
    %992 = vmatpush1.msra.mxu0 0.0
    %993 = vmatprep.subr.mxu0 0.0
    %994 = vmatpush1.msra.mxu0 0.0
    %995 = vmatprep.subr.mxu0 0.0
    %996 = vmatpush1.msra.mxu0 0.0
    %997 = vmatprep.subr.mxu0 0.0
    %998 = vmatpush1.msra.mxu0 0.0
    %999 = vmatprep.subr.mxu0 0.0
    %1000 = vmatpush1.msra.mxu0 0.0
    %1001 = vmatprep.subr.mxu0 0.0
    %1002 = vmatpush1.msra.mxu0 0.0
    %1003 = vmatprep.subr.mxu0 0.0
    %1004 = vmatpush1.msra.mxu0 %v945
    %1005 = vmatprep.subr.mxu0 0.0
    %1006 = vmatpush1.msra.mxu0 %v944
    %1007 = vmatprep.subr.mxu0 0.0
    %1008 = vmatpush1.msra.mxu0 %v943
    %1009 = vmatprep.subr.mxu0 0.0
    %1010 = vmatpush1.msra.mxu0 %v942
    %1011 = vmatprep.subr.mxu0 0.0
    %1012 = vmatpush1.msra.mxu0 %v941
    %1013 = vmatprep.subr.mxu0 0.0
    %1014 = vmatpush1.msra.mxu0 %v940
    %1015 = vmatprep.subr.mxu0 0.0
    %1016 = vmatpush1.msra.mxu0 %v939
    %1017 = vmatprep.subr.mxu0 0.0
    %1018 = vmatpush1.msra.mxu0 %v938
    %1019 = vmatprep.subr.mxu0 0.0
    %1020 = vmatpush2.msra.mxu0 0.0
    %1021 = vmatprep.subr.mxu0 0.0
    %1022 = vmatpush2.msra.mxu0 0.0
    %1023 = vmatprep.subr.mxu0 0.0
    %1024 = vmatpush2.msra.mxu0 0.0
    %1025 = vmatprep.subr.mxu0 0.0
    %1026 = vmatpush2.msra.mxu0 0.0
    %1027 = vmatprep.subr.mxu0 0.0
    %1028 = vmatpush2.msra.mxu0 0.0
    %1029 = vmatprep.subr.mxu0 0.0
    %1030 = vmatpush2.msra.mxu0 0.0
    %1031 = vmatprep.subr.mxu0 0.0
    %1032 = vmatpush2.msra.mxu0 0.0
    %1033 = vmatprep.subr.mxu0 0.0
    %1034 = vmatpush2.msra.mxu0 0.0
    %1035 = vmatprep.subr.mxu0 0.0
    %1036 = vmatpush2.msra.mxu0 0.0
    %1037 = vmatprep.subr.mxu0 0.0
    %1038 = vmatpush2.msra.mxu0 0.0
    %1039 = vmatprep.subr.mxu0 0.0
    %1040 = vmatpush2.msra.mxu0 0.0
    %1041 = vmatprep.subr.mxu0 0.0
    %1042 = vmatpush2.msra.mxu0 0.0
    %1043 = vmatprep.subr.mxu0 0.0
    %1044 = vmatpush2.msra.mxu0 0.0
    %1045 = vmatprep.subr.mxu0 0.0
    %1046 = vmatpush2.msra.mxu0 0.0
    %1047 = vmatprep.subr.mxu0 0.0
    %1048 = vmatpush2.msra.mxu0 0.0
    %1049 = vmatprep.subr.mxu0 0.0
    %1050 = vmatpush2.msra.mxu0 0.0
    %1051 = vmatprep.mubr.f32.mxu0 0.0
    %1052 = vmatmul.mubr.f32.gmra.mxu0 %v976
    %v1053 = vpop.f32.mrf.mxu0
    %v1054 = vadd.f32 %v957, %v1053
    %v1055 = vpop.f32.mrf.mxu0
    %1056 = vmatprep.mubr.f32.mxu0 0.0
    %1057 = vmatmul.mubr.f32.gmra.mxu0 %v979
    %v1058 = vpop.f32.mrf.mxu0
    %v1059 = vadd.f32 %v962, %v1058
    %v1060 = vpop.f32.mrf.mxu0
    %1061 = vmatprep.mubr.f32.mxu0 0.0
    %1062 = vmatmul.mubr.f32.gmra.mxu0 %v982
    %v1063 = vpop.f32.mrf.mxu0
    %v1064 = vadd.f32 %v967, %v1063
    %v1065 = vpop.f32.mrf.mxu0
    %1066 = vmatprep.mubr.f32.mxu0 0.0
    %1067 = vmatmul.mubr.f32.gmra.mxu0 %v985
    %v1068 = vpop.f32.mrf.mxu0
    %v1069 = vadd.f32 %v972, %v1068
    %v1070 = vpop.f32.mrf.mxu0
    %1071 = vdwg.mxu0
    %v1072 = vmax.f32 %v1054, 0.0
    %v1073 = vmax.f32 %v1059, 0.0
    %v1074 = vmax.f32 %v1064, 0.0
    %v1075 = vmax.f32 %v1069, 0.0
    %v1076 = vld [vmem:[#allocation2 + $0x2e0] sm:$0xff]
    %v1077 = vld [vmem:[#allocation2 + $0x2f0] sm:$0xff]
    %v1078 = vld [vmem:[%s2 + $0x170] sm:$0xff]
    %v1079 = vld [vmem:[%s2 + $0x178] sm:$0xff]
    %1081 = vset.pattern.permute.xlu0 0
    %1082 = vperm.xlu0 %1081, %v1078
    %v1083 = vpop.permute.xlu0 %1082
    %1086 = vset.pattern.permute.xlu0 0
    %1087 = vperm.xlu0 %1086, %v1079
    %v1088 = vpop.permute.xlu0 %1087
    %vm1090 = vcmask 261120
    %v1092 = vsel %vm1090, %v1076, 0
    %v1095 = vsel %vm1090, %v1077, 0
    %1097 = vmatprep.subr.mxu0 0.0
    %1098 = vmatpush1.msra.mxu0 0.0
    %1099 = vmatprep.subr.mxu0 0.0
    %1100 = vmatpush1.msra.mxu0 0.0
    %1101 = vmatprep.subr.mxu0 0.0
    %1102 = vmatpush1.msra.mxu0 0.0
    %1103 = vmatprep.subr.mxu0 0.0
    %1104 = vmatpush1.msra.mxu0 0.0
    %1105 = vmatprep.subr.mxu0 0.0
    %1106 = vmatpush1.msra.mxu0 0.0
    %1107 = vmatprep.subr.mxu0 0.0
    %1108 = vmatpush1.msra.mxu0 0.0
    %1109 = vmatprep.subr.mxu0 0.0
    %1110 = vmatpush1.msra.mxu0 0.0
    %1111 = vmatprep.subr.mxu0 0.0
    %1112 = vmatpush1.msra.mxu0 0.0
    %1113 = vmatprep.subr.mxu0 0.0
    %1114 = vmatpush1.msra.mxu0 0.0
    %1115 = vmatprep.subr.mxu0 0.0
    %1116 = vmatpush1.msra.mxu0 0.0
    %1117 = vmatprep.subr.mxu0 0.0
    %1118 = vmatpush1.msra.mxu0 0.0
    %1119 = vmatprep.subr.mxu0 0.0
    %1120 = vmatpush1.msra.mxu0 0.0
    %1121 = vmatprep.subr.mxu0 0.0
    %1122 = vmatpush1.msra.mxu0 %v1075
    %1123 = vmatprep.subr.mxu0 0.0
    %1124 = vmatpush1.msra.mxu0 %v1074
    %1125 = vmatprep.subr.mxu0 0.0
    %1126 = vmatpush1.msra.mxu0 %v1073
    %1127 = vmatprep.subr.mxu0 0.0
    %1128 = vmatpush1.msra.mxu0 %v1072
    %1129 = vmatprep.subr.mxu0 0.0
    %1130 = vmatpush2.msra.mxu0 0.0
    %1131 = vmatprep.subr.mxu0 0.0
    %1132 = vmatpush2.msra.mxu0 0.0
    %1133 = vmatprep.subr.mxu0 0.0
    %1134 = vmatpush2.msra.mxu0 0.0
    %1135 = vmatprep.subr.mxu0 0.0
    %1136 = vmatpush2.msra.mxu0 0.0
    %1137 = vmatprep.subr.mxu0 0.0
    %1138 = vmatpush2.msra.mxu0 0.0
    %1139 = vmatprep.subr.mxu0 0.0
    %1140 = vmatpush2.msra.mxu0 0.0
    %1141 = vmatprep.subr.mxu0 0.0
    %1142 = vmatpush2.msra.mxu0 0.0
    %1143 = vmatprep.subr.mxu0 0.0
    %1144 = vmatpush2.msra.mxu0 0.0
    %1145 = vmatprep.subr.mxu0 0.0
    %1146 = vmatpush2.msra.mxu0 0.0
    %1147 = vmatprep.subr.mxu0 0.0
    %1148 = vmatpush2.msra.mxu0 0.0
    %1149 = vmatprep.subr.mxu0 0.0
    %1150 = vmatpush2.msra.mxu0 0.0
    %1151 = vmatprep.subr.mxu0 0.0
    %1152 = vmatpush2.msra.mxu0 0.0
    %1153 = vmatprep.subr.mxu0 0.0
    %1154 = vmatpush2.msra.mxu0 0.0
    %1155 = vmatprep.subr.mxu0 0.0
    %1156 = vmatpush2.msra.mxu0 0.0
    %1157 = vmatprep.subr.mxu0 0.0
    %1158 = vmatpush2.msra.mxu0 0.0
    %1159 = vmatprep.subr.mxu0 0.0
    %1160 = vmatpush2.msra.mxu0 0.0
    %1161 = vmatprep.mubr.f32.mxu0 0.0
    %1162 = vmatmul.mubr.f32.gmra.mxu0 %v1092
    %v1163 = vpop.f32.mrf.mxu0
    %v1164 = vadd.f32 %v1083, %v1163
    %v1165 = vpop.f32.mrf.mxu0
    %1166 = vmatprep.mubr.f32.mxu0 0.0
    %1167 = vmatmul.mubr.f32.gmra.mxu0 %v1095
    %v1168 = vpop.f32.mrf.mxu0
    %v1169 = vadd.f32 %v1088, %v1168
    %v1170 = vpop.f32.mrf.mxu0
    %1171 = vdwg.mxu0
    %v1172 = vmax.f32 %v1164, 0.0
    %v1173 = vmax.f32 %v1169, 0.0
    %v1174 = vld [vmem:[#allocation2 + $0x300] ss:$0 sm:$0xff]
    %v1175 = vld [vmem:[%s2 + $0x180] sm:$0x1]
    %1177 = vset.pattern.permute.xlu0 0
    %1178 = vperm.xlu0 %1177, %v1175
    %v1179 = vpop.permute.xlu0 %1178
    %v1182 = vsel %vm415, %v1174, 0
    %1184 = vmatprep.subr.mxu0 0.0
    %1185 = vmatpush1.msra.mxu0 0.0
    %1186 = vmatprep.subr.mxu0 0.0
    %1187 = vmatpush1.msra.mxu0 0.0
    %1188 = vmatprep.subr.mxu0 0.0
    %1189 = vmatpush1.msra.mxu0 0.0
    %1190 = vmatprep.subr.mxu0 0.0
    %1191 = vmatpush1.msra.mxu0 0.0
    %1192 = vmatprep.subr.mxu0 0.0
    %1193 = vmatpush1.msra.mxu0 0.0
    %1194 = vmatprep.subr.mxu0 0.0
    %1195 = vmatpush1.msra.mxu0 0.0
    %1196 = vmatprep.subr.mxu0 0.0
    %1197 = vmatpush1.msra.mxu0 0.0
    %1198 = vmatprep.subr.mxu0 0.0
    %1199 = vmatpush1.msra.mxu0 0.0
    %1200 = vmatprep.subr.mxu0 0.0
    %1201 = vmatpush1.msra.mxu0 0.0
    %1202 = vmatprep.subr.mxu0 0.0
    %1203 = vmatpush1.msra.mxu0 0.0
    %1204 = vmatprep.subr.mxu0 0.0
    %1205 = vmatpush1.msra.mxu0 0.0
    %1206 = vmatprep.subr.mxu0 0.0
    %1207 = vmatpush1.msra.mxu0 0.0
    %1208 = vmatprep.subr.mxu0 0.0
    %1209 = vmatpush1.msra.mxu0 0.0
    %1210 = vmatprep.subr.mxu0 0.0
    %1211 = vmatpush1.msra.mxu0 0.0
    %1212 = vmatprep.subr.mxu0 0.0
    %1213 = vmatpush1.msra.mxu0 %v1173
    %1214 = vmatprep.subr.mxu0 0.0
    %1215 = vmatpush1.msra.mxu0 %v1172
    %1216 = vmatprep.subr.mxu0 0.0
    %1217 = vmatpush2.msra.mxu0 0.0
    %1218 = vmatprep.subr.mxu0 0.0
    %1219 = vmatpush2.msra.mxu0 0.0
    %1220 = vmatprep.subr.mxu0 0.0
    %1221 = vmatpush2.msra.mxu0 0.0
    %1222 = vmatprep.subr.mxu0 0.0
    %1223 = vmatpush2.msra.mxu0 0.0
    %1224 = vmatprep.subr.mxu0 0.0
    %1225 = vmatpush2.msra.mxu0 0.0
    %1226 = vmatprep.subr.mxu0 0.0
    %1227 = vmatpush2.msra.mxu0 0.0
    %1228 = vmatprep.subr.mxu0 0.0
    %1229 = vmatpush2.msra.mxu0 0.0
    %1230 = vmatprep.subr.mxu0 0.0
    %1231 = vmatpush2.msra.mxu0 0.0
    %1232 = vmatprep.subr.mxu0 0.0
    %1233 = vmatpush2.msra.mxu0 0.0
    %1234 = vmatprep.subr.mxu0 0.0
    %1235 = vmatpush2.msra.mxu0 0.0
    %1236 = vmatprep.subr.mxu0 0.0
    %1237 = vmatpush2.msra.mxu0 0.0
    %1238 = vmatprep.subr.mxu0 0.0
    %1239 = vmatpush2.msra.mxu0 0.0
    %1240 = vmatprep.subr.mxu0 0.0
    %1241 = vmatpush2.msra.mxu0 0.0
    %1242 = vmatprep.subr.mxu0 0.0
    %1243 = vmatpush2.msra.mxu0 0.0
    %1244 = vmatprep.subr.mxu0 0.0
    %1245 = vmatpush2.msra.mxu0 0.0
    %1246 = vmatprep.subr.mxu0 0.0
    %1247 = vmatpush2.msra.mxu0 0.0
    %1248 = vmatprep.mubr.f32.mxu0 0.0
    %1249 = vmatmul.mubr.f32.gmra.mxu0 %v1182
    %v1250 = vpop.f32.mrf.mxu0
    %v1251 = vadd.f32 %v1179, %v1250
    %v1252 = vpop.f32.mrf.mxu0
    %1253 = vdwg.mxu0
    %1254 = vst [vmem:[#allocation5] sm:$0x1] %v1251
    // Predicated region
    $region18: #{tpu_custom_call.1} parent=1 // pred_check
      _
    $region19: #{tpu_custom_call.1} parent=1 // pred_check_branch
      %1256 = sbr.rel (0) target = $region21
    $region20: #{tpu_custom_call.1} parent=1 // pred_region
      %s1258 = ssub.s32 16, 16
      %1259 = vsyncadd [#allocation4], %s1258
      %s1261 = sshll.u32 [#allocation5], 4
      %s1262 = int_to_ptr.vmem [resolvable:$true] %s1261
      %1264 = dma.vmem_to_hbm [thread:$0]  %s1262, 16, %s3, [#allocation4]
    $region21: #{tpu_custom_call.1} parent=1 // pred_fallthru
      _
    // Predicated region
    $region22: #{tpu_custom_call.1} parent=1 // pred_check
      _
    $region23: #{tpu_custom_call.1} parent=1 // pred_check_branch
      %1266 = sbr.rel (0) target = $region25
    $region24: #{tpu_custom_call.1} parent=1 // pred_region
      %1267 = dma.done [#allocation4], 16
    $region25: #{tpu_custom_call.1} parent=1 // pred_fallthru
      _
    %1268 = vsyncpa [#allocation3], 1
    %1269 = vsyncpa [#allocation4], 1

</llo_original>
